<compile_context>
chip_gen: v7x
topology: tpu7x:2x2x1
jax: 0.10.0
libtpu: 0.0.40
codegen_flags: <defaults>
</compile_context>

<pallas_src>
import functools

import jax
import jax.numpy as jnp
from jax.experimental import pallas as pl
from jax.experimental.pallas import tpu as pltpu

LN_EPS = 1e-5  # torch.nn.LayerNorm default


def _discriminator_kernel(z_ref, obs_ref, w0z_ref, w0o_ref, b0_ref, g_ref,
                          beta_ref, *rest, n_hidden_rep):
    if n_hidden_rep > 0:
        wh_ref, bh_ref, wf_ref, bf_ref, out_ref = rest
    else:
        wf_ref, bf_ref, out_ref = rest

    cdt = w0z_ref.dtype  # matmul compute dtype (f32, or bf16 for MXU-native)

    # ---- first Linear, concat fused via split weight (x = [z, obs]) --------
    h = jnp.dot(z_ref[...].astype(cdt), w0z_ref[...],
                preferred_element_type=jnp.float32)
    h = h + jnp.dot(obs_ref[...].astype(cdt), w0o_ref[...],
                    preferred_element_type=jnp.float32)
    h = h + b0_ref[...].astype(jnp.float32)

    # ---- LayerNorm (biased var, eps inside rsqrt) + Tanh, in f32 -----------
    mu = jnp.mean(h, axis=-1, keepdims=True)
    var = jnp.mean((h - mu) ** 2, axis=-1, keepdims=True)
    h = (h - mu) * jax.lax.rsqrt(var + LN_EPS)
    h = h * g_ref[...].astype(jnp.float32) + beta_ref[...].astype(jnp.float32)
    h = jnp.tanh(h)

    # ---- (hidden_layers - 1) x [Linear + ReLU], static unroll --------------
    for l in range(n_hidden_rep):
        h = jnp.dot(h.astype(cdt), wh_ref[l],
                    preferred_element_type=jnp.float32)
        h = jnp.maximum(h + bh_ref[l].astype(jnp.float32), 0.0)

    # ---- final Linear(H -> 1): VPU multiply + lane reduce, bias from SMEM --
    logits = jnp.sum(h * wf_ref[...].astype(jnp.float32), axis=-1)   # (TB,)
    logits = logits + bf_ref[0]
    # lane-dense store: one (1, tile_b) row per grid step
    out_ref[...] = jax.nn.sigmoid(logits).reshape(1, -1).astype(out_ref.dtype)


def _const_spec(shape):
    """BlockSpec for a grid-invariant (constant index) weight/bias block.

    Single-buffered: the same block is reused every grid step, so a second
    buffer would only double the resident weight VMEM (matters on v7x's
    64 MiB VMEM and under v5e's 16 MiB default scoped VMEM).
    """
    idx = (lambda i: (0, 0)) if len(shape) == 2 else (lambda i: (0, 0, 0))
    kwargs = {}
    if hasattr(pl, "Buffered"):
        kwargs["pipeline_mode"] = pl.Buffered(1)
    return pl.BlockSpec(shape, idx, **kwargs)


def _vmem_cap_bytes():
    """Per-generation VMEM ceiling with headroom for Mosaic internal scratch."""
    try:
        cap = int(pltpu.get_tpu_info().vmem_capacity_bytes)
    except Exception:
        cap = 64 << 20          # conservative: v7x has 64 MiB per TensorCore
    return max(cap - (12 << 20), 32 << 20)


def _pallas_forward(obs, z, params, *, tb):
    """One pallas_call over a batch chunk whose size is a multiple of tb."""
    Bc, od = obs.shape
    zd = z.shape[1]
    H = params["w0z"].shape[1]
    wh = params.get("wh", None)
    n_rep = 0 if wh is None else int(wh.shape[0])
    assert Bc % tb == 0
    grid = (Bc // tb,)

    in_specs = [
        pl.BlockSpec((tb, zd), lambda i: (i, 0)),     # z   (batch tiled)
        pl.BlockSpec((tb, od), lambda i: (i, 0)),     # obs (batch tiled)
        _const_spec(params["w0z"].shape),             # w0[:z_dim]
        _const_spec(params["w0o"].shape),             # w0[z_dim:]
        _const_spec(params["b0"].shape),
        _const_spec(params["ln_g"].shape),
        _const_spec(params["ln_b"].shape),
    ]
    args = [z, obs, params["w0z"], params["w0o"], params["b0"],
            params["ln_g"], params["ln_b"]]
    if n_rep > 0:
        in_specs += [_const_spec(params["wh"].shape),
                     _const_spec(params["bh"].shape)]
        args += [params["wh"], params["bh"]]
    in_specs += [
        _const_spec(params["wf"].shape),                        # (1, H) row
        pl.BlockSpec(memory_space=pltpu.MemorySpace.SMEM),      # bf scalar
    ]
    args += [params["wf"], params["bf"]]

    # VMEM budget: single-buffered weights + double-buffered activation tiles
    # + f32 intermediates + headroom, clamped to the per-generation ceiling.
    weight_bytes = sum(int(a.size) * a.dtype.itemsize for a in args[2:])
    act_bytes = (int(tb) * zd * z.dtype.itemsize
                 + int(tb) * od * obs.dtype.itemsize
                 + int(tb) * 4)                                  # output row
    inter_bytes = 4 * int(tb) * H * 4                            # f32 temps
    vmem_limit = weight_bytes + 2 * act_bytes + inter_bytes + (8 << 20)
    vmem_limit = int(min(max(vmem_limit, 16 << 20), _vmem_cap_bytes()))

    # Advisory cost estimate so XLA schedules neighbors around this call.
    flops = 2 * Bc * (H * (zd + od) + n_rep * H * H + H)
    cost = pl.CostEstimate(
        flops=int(flops),
        transcendentals=int(Bc * (H + 1)),           # tanh + sigmoid
        bytes_accessed=int(weight_bytes + Bc * (zd + od) * 4 + Bc * 4),
    )

    kernel = functools.partial(_discriminator_kernel, n_hidden_rep=n_rep)

    return pl.pallas_call(
        kernel,
        out_shape=jax.ShapeDtypeStruct((1, Bc), jnp.float32),
        grid_spec=pltpu.PrefetchScalarGridSpec(
            num_scalar_prefetch=0,
            grid=grid,
            in_specs=in_specs,
            out_specs=pl.BlockSpec((1, tb), lambda i: (0, i)),   # lane-dense
        ),
        compiler_params=pltpu.CompilerParams(
            dimension_semantics=("parallel",),
            vmem_limit_bytes=vmem_limit),
        cost_estimate=cost,
    )(*args)


def discriminator_forward(obs, z, params, *, tile_b=512):
    """obs: (B, obs_dim), z: (B, z_dim) -> (B, 1) sigmoid probabilities."""
    B = obs.shape[0]

    if B < 256:
        # Single full-extent block: no padding needed (full-dim blocks are
        # exempt from the (8, 128) divisibility rule), grid = (1,).
        return _pallas_forward(obs, z, params, tb=B).reshape(B, 1)

    # Lane-dense tile (multiple of 128 -> unmasked (1, tb) output stores and a
    # tall MXU M), capped so the grid has >= 2 steps: the "parallel" batch axis
    # then shards across both v7x TensorCores.
    tb_cap = max(128, (int(tile_b) // 128) * 128)
    tb = max(128, min(tb_cap, ((B // 2) // 128) * 128))
    n_main = (B // tb) * tb

    pieces = [_pallas_forward(obs[:n_main], z[:n_main], params,
                              tb=tb).reshape(n_main, 1)]
    if n_main < B:
        # Ragged tail: one small full-block call instead of padding the whole
        # batch (jnp.pad would re-copy all activations in HBM).
        nt = B - n_main
        pieces.append(_pallas_forward(obs[n_main:], z[n_main:], params,
                                      tb=nt).reshape(nt, 1))
    return pieces[0] if len(pieces) == 1 else jnp.concatenate(pieces, axis=0)


def init_params(key, obs_dim, z_dim, hidden_dim, hidden_layers,
                matmul_dtype=jnp.float32):
    """Deterministic synthetic init (shapes match the PyTorch module)."""
    din = obs_dim + z_dim
    n_rep = hidden_layers - 1
    ks = jax.random.split(key, 6)
    s0 = 1.0 / jnp.sqrt(din)
    sh = 1.0 / jnp.sqrt(hidden_dim)
    w0 = jax.random.uniform(ks[0], (din, hidden_dim), jnp.float32, -s0, s0)
    params = {
        # first-layer weight pre-split so the kernel can fuse the concat
        "w0z": w0[:z_dim].astype(matmul_dtype),
        "w0o": w0[z_dim:].astype(matmul_dtype),
        "b0": jax.random.uniform(ks[1], (1, hidden_dim), jnp.float32, -s0, s0),
        "ln_g": jnp.ones((1, hidden_dim), jnp.float32),
        "ln_b": jnp.zeros((1, hidden_dim), jnp.float32),
        "wf": jax.random.uniform(ks[4], (1, hidden_dim), jnp.float32, -sh, sh),
        "bf": jax.random.uniform(ks[5], (1,), jnp.float32, -sh, sh),
    }
    if n_rep > 0:
        params["wh"] = jax.random.uniform(
            ks[2], (n_rep, hidden_dim, hidden_dim), jnp.float32,
            -sh, sh).astype(matmul_dtype)
        params["bh"] = jax.random.uniform(
            ks[3], (n_rep, 1, hidden_dim), jnp.float32, -sh, sh)
    return params


def _reference(obs, z, params):
    """Pure-JAX reference of the same forward pass (f32)."""
    h = (z @ params["w0z"].astype(jnp.float32)
         + obs @ params["w0o"].astype(jnp.float32) + params["b0"])
    mu = jnp.mean(h, -1, keepdims=True)
    var = jnp.mean((h - mu) ** 2, -1, keepdims=True)
    h = (h - mu) / jnp.sqrt(var + LN_EPS) * params["ln_g"] + params["ln_b"]
    h = jnp.tanh(h)
    if "wh" in params:
        for l in range(params["wh"].shape[0]):
            h = jnp.maximum(
                h @ params["wh"][l].astype(jnp.float32) + params["bh"][l], 0.0)
    logits = jnp.sum(h * params["wf"], -1, keepdims=True) + params["bf"]
    return jax.nn.sigmoid(logits)


if __name__ == "__main__":
    key = jax.random.PRNGKey(0)
    k_obs, k_z, k_p = jax.random.split(key, 3)

    batch, obs_dim, z_dim, hidden_dim, hidden_layers = 16, 24, 8, 32, 2

    obs = jax.random.normal(k_obs, (batch, obs_dim), jnp.float32)
    z = jax.random.normal(k_z, (batch, z_dim), jnp.float32)
    params = init_params(k_p, obs_dim, z_dim, hidden_dim, hidden_layers)

    # f32 path (small batch -> single full-block call)
    out = jax.block_until_ready(discriminator_forward(obs, z, params))
    ref = _reference(obs, z, params)
    assert out.shape == (batch, 1)
    assert jnp.allclose(out, ref, atol=1e-5, rtol=1e-5)

    # hidden_layers == 1 edge case (no ReLU blocks at all)
    params1 = init_params(k_p, obs_dim, z_dim, hidden_dim, 1)
    out1 = jax.block_until_ready(discriminator_forward(obs, z, params1))
    assert jnp.allclose(out1, _reference(obs, z, params1), atol=1e-5, rtol=1e-5)

    # ragged small batch (full-block single call, no padding)
    out_r = jax.block_until_ready(
        discriminator_forward(obs[:10], z[:10], params))
    assert out_r.shape == (10, 1)
    assert jnp.allclose(out_r, ref[:10], atol=1e-5, rtol=1e-5)

    # larger ragged batch: exercises grid >= 2 main call + small tail call
    Bl = 300
    obs_l = jax.random.normal(jax.random.PRNGKey(1), (Bl, obs_dim), jnp.float32)
    z_l = jax.random.normal(jax.random.PRNGKey(2), (Bl, z_dim), jnp.float32)
    out_l = jax.block_until_ready(discriminator_forward(obs_l, z_l, params))
    assert out_l.shape == (Bl, 1)
    assert jnp.allclose(out_l, _reference(obs_l, z_l, params),
                        atol=1e-5, rtol=1e-5)

    # bf16 matmul weights (MXU-native on all generations), f32 accumulation
    params_bf16 = dict(params)
    for name in ("w0z", "w0o", "wh"):
        params_bf16[name] = params[name].astype(jnp.bfloat16)
    out_bf16 = jax.block_until_ready(
        discriminator_forward(obs, z, params_bf16))
    assert jnp.allclose(out_bf16, ref, atol=2e-2, rtol=2e-2)

    print("KERNEL_OK")
</pallas_src>

<mosaic_0001>
module attributes {stable_mosaic.version = 11 : i64} {
  func.func @_discriminator_kernel(%arg0: i32, %arg1: memref<16x8xf32, #tpu.memory_space<vmem>>, %arg2: memref<16x24xf32, #tpu.memory_space<vmem>>, %arg3: memref<8x32xf32, #tpu.memory_space<vmem>>, %arg4: memref<24x32xf32, #tpu.memory_space<vmem>>, %arg5: memref<1x32xf32, #tpu.memory_space<vmem>>, %arg6: memref<1x32xf32, #tpu.memory_space<vmem>>, %arg7: memref<1x32xf32, #tpu.memory_space<vmem>>, %arg8: memref<1x32x32xf32, #tpu.memory_space<vmem>>, %arg9: memref<1x1x32xf32, #tpu.memory_space<vmem>>, %arg10: memref<1x32xf32, #tpu.memory_space<vmem>>, %arg11: memref<1xf32, #tpu.memory_space<smem>>, %arg12: memref<1x16xf32, #tpu.memory_space<vmem>>) attributes {dimension_semantics = [#tpu.dimension_semantics<parallel>], iteration_bounds = array<i64: 1>, scalar_prefetch = 0 : i64, scratch_operands = 0 : i64, tpu.core_type = #tpu.core_type<tc>, window_params = [{transform_indices = @transform_0, window_bounds = array<i64: 16, 8>}, {transform_indices = @transform_1, window_bounds = array<i64: 16, 24>}, {pipeline_mode = #tpu.pipeline_mode<synchronous>, transform_indices = @transform_2, window_bounds = array<i64: 8, 32>}, {pipeline_mode = #tpu.pipeline_mode<synchronous>, transform_indices = @transform_3, window_bounds = array<i64: 24, 32>}, {pipeline_mode = #tpu.pipeline_mode<synchronous>, transform_indices = @transform_4, window_bounds = array<i64: 1, 32>}, {pipeline_mode = #tpu.pipeline_mode<synchronous>, transform_indices = @transform_5, window_bounds = array<i64: 1, 32>}, {pipeline_mode = #tpu.pipeline_mode<synchronous>, transform_indices = @transform_6, window_bounds = array<i64: 1, 32>}, {pipeline_mode = #tpu.pipeline_mode<synchronous>, transform_indices = @transform_7, window_bounds = array<i64: 1, 32, 32>}, {pipeline_mode = #tpu.pipeline_mode<synchronous>, transform_indices = @transform_8, window_bounds = array<i64: 1, 1, 32>}, {pipeline_mode = #tpu.pipeline_mode<synchronous>, transform_indices = @transform_9, window_bounds = array<i64: 1, 32>}, {transform_indices = @transform_10, window_bounds = array<i64: 1>}, {transform_indices = @transform_11, window_bounds = array<i64: 1, 16>}]} {
    %c0 = arith.constant 0 : index
    %c0_0 = arith.constant 0 : index
    %0 = vector.load %arg1[%c0, %c0_0] : memref<16x8xf32, #tpu.memory_space<vmem>>, vector<16x8xf32>
    %c0_1 = arith.constant 0 : index
    %c0_2 = arith.constant 0 : index
    %1 = vector.load %arg3[%c0_1, %c0_2] : memref<8x32xf32, #tpu.memory_space<vmem>>, vector<8x32xf32>
    %cst = arith.constant dense<0.000000e+00> : vector<16x32xf32>
    %2 = tpu.matmul %0, %1, %cst {dimension_numbers = #tpu.dot_dimension_numbers<[1], [0], [0], [1], [0, 0, 1, 1], [], []>} : vector<16x8xf32>, vector<8x32xf32>, vector<16x32xf32> -> vector<16x32xf32>
    %c0_3 = arith.constant 0 : index
    %c0_4 = arith.constant 0 : index
    %3 = vector.load %arg2[%c0_3, %c0_4] : memref<16x24xf32, #tpu.memory_space<vmem>>, vector<16x24xf32>
    %c0_5 = arith.constant 0 : index
    %c0_6 = arith.constant 0 : index
    %4 = vector.load %arg4[%c0_5, %c0_6] : memref<24x32xf32, #tpu.memory_space<vmem>>, vector<24x32xf32>
    %cst_7 = arith.constant dense<0.000000e+00> : vector<16x32xf32>
    %5 = tpu.matmul %3, %4, %cst_7 {dimension_numbers = #tpu.dot_dimension_numbers<[1], [0], [0], [1], [0, 0, 1, 1], [], []>} : vector<16x24xf32>, vector<24x32xf32>, vector<16x32xf32> -> vector<16x32xf32>
    %6 = arith.addf %2, %5 : vector<16x32xf32>
    %c0_8 = arith.constant 0 : index
    %c0_9 = arith.constant 0 : index
    %7 = vector.load %arg5[%c0_8, %c0_9] : memref<1x32xf32, #tpu.memory_space<vmem>>, vector<1x32xf32>
    %8 = vector.broadcast %7 : vector<1x32xf32> to vector<16x32xf32>
    %9 = arith.addf %6, %8 : vector<16x32xf32>
    %cst_10 = arith.constant dense<0.000000e+00> : vector<16xf32>
    %10 = vector.multi_reduction <add>, %9, %cst_10 [1] : vector<16x32xf32> to vector<16xf32>
    %11 = vector.shape_cast %10 : vector<16xf32> to vector<16x1xf32>
    %cst_11 = arith.constant 3.200000e+01 : f32
    %12 = vector.broadcast %cst_11 : f32 to vector<16x1xf32>
    %13 = arith.divf %11, %12 : vector<16x1xf32>
    %14 = vector.broadcast %13 : vector<16x1xf32> to vector<16x32xf32>
    %15 = arith.subf %9, %14 : vector<16x32xf32>
    %16 = arith.mulf %15, %15 : vector<16x32xf32>
    %cst_12 = arith.constant dense<0.000000e+00> : vector<16xf32>
    %17 = vector.multi_reduction <add>, %16, %cst_12 [1] : vector<16x32xf32> to vector<16xf32>
    %18 = vector.shape_cast %17 : vector<16xf32> to vector<16x1xf32>
    %cst_13 = arith.constant 3.200000e+01 : f32
    %19 = vector.broadcast %cst_13 : f32 to vector<16x1xf32>
    %20 = arith.divf %18, %19 : vector<16x1xf32>
    %21 = vector.broadcast %13 : vector<16x1xf32> to vector<16x32xf32>
    %22 = arith.subf %9, %21 : vector<16x32xf32>
    %cst_14 = arith.constant 9.99999974E-6 : f32
    %23 = vector.broadcast %cst_14 : f32 to vector<16x1xf32>
    %24 = arith.addf %20, %23 : vector<16x1xf32>
    %25 = math.rsqrt %24 : vector<16x1xf32>
    %26 = vector.broadcast %25 : vector<16x1xf32> to vector<16x32xf32>
    %27 = arith.mulf %22, %26 : vector<16x32xf32>
    %c0_15 = arith.constant 0 : index
    %c0_16 = arith.constant 0 : index
    %28 = vector.load %arg6[%c0_15, %c0_16] : memref<1x32xf32, #tpu.memory_space<vmem>>, vector<1x32xf32>
    %29 = vector.broadcast %28 : vector<1x32xf32> to vector<16x32xf32>
    %30 = arith.mulf %27, %29 : vector<16x32xf32>
    %c0_17 = arith.constant 0 : index
    %c0_18 = arith.constant 0 : index
    %31 = vector.load %arg7[%c0_17, %c0_18] : memref<1x32xf32, #tpu.memory_space<vmem>>, vector<1x32xf32>
    %32 = vector.broadcast %31 : vector<1x32xf32> to vector<16x32xf32>
    %33 = arith.addf %30, %32 : vector<16x32xf32>
    %34 = math.tanh %33 : vector<16x32xf32>
    %c0_19 = arith.constant 0 : index
    %c0_20 = arith.constant 0 : index
    %c0_21 = arith.constant 0 : index
    %35 = vector.load %arg8[%c0_19, %c0_20, %c0_21] : memref<1x32x32xf32, #tpu.memory_space<vmem>>, vector<1x32x32xf32>
    %36 = vector.shape_cast %35 : vector<1x32x32xf32> to vector<32x32xf32>
    %cst_22 = arith.constant dense<0.000000e+00> : vector<16x32xf32>
    %37 = tpu.matmul %34, %36, %cst_22 {dimension_numbers = #tpu.dot_dimension_numbers<[1], [0], [0], [1], [0, 0, 1, 1], [], []>} : vector<16x32xf32>, vector<32x32xf32>, vector<16x32xf32> -> vector<16x32xf32>
    %c0_23 = arith.constant 0 : index
    %c0_24 = arith.constant 0 : index
    %c0_25 = arith.constant 0 : index
    %38 = vector.load %arg9[%c0_23, %c0_24, %c0_25] : memref<1x1x32xf32, #tpu.memory_space<vmem>>, vector<1x1x32xf32>
    %39 = vector.shape_cast %38 : vector<1x1x32xf32> to vector<1x32xf32>
    %40 = vector.broadcast %39 : vector<1x32xf32> to vector<16x32xf32>
    %41 = arith.addf %37, %40 : vector<16x32xf32>
    %cst_26 = arith.constant 0.000000e+00 : f32
    %42 = vector.broadcast %cst_26 : f32 to vector<16x32xf32>
    %43 = arith.maximumf %41, %42 : vector<16x32xf32>
    %c0_27 = arith.constant 0 : index
    %c0_28 = arith.constant 0 : index
    %44 = vector.load %arg10[%c0_27, %c0_28] : memref<1x32xf32, #tpu.memory_space<vmem>>, vector<1x32xf32>
    %45 = vector.broadcast %44 : vector<1x32xf32> to vector<16x32xf32>
    %46 = arith.mulf %43, %45 : vector<16x32xf32>
    %cst_29 = arith.constant dense<0.000000e+00> : vector<16xf32>
    %47 = vector.multi_reduction <add>, %46, %cst_29 [1] : vector<16x32xf32> to vector<16xf32>
    %c0_30 = arith.constant 0 : index
    %48 = memref.load %arg11[%c0_30] : memref<1xf32, #tpu.memory_space<smem>>
    %49 = vector.broadcast %48 : f32 to vector<16xf32>
    %50 = arith.addf %47, %49 : vector<16xf32>
    %51 = arith.negf %50 : vector<16xf32>
    %52 = math.exp %51 : vector<16xf32>
    %cst_31 = arith.constant 1.000000e+00 : f32
    %53 = vector.broadcast %cst_31 : f32 to vector<16xf32>
    %54 = arith.addf %53, %52 : vector<16xf32>
    %55 = arith.divf %53, %54 : vector<16xf32>
    %56 = vector.shape_cast %55 : vector<16xf32> to vector<1x16xf32>
    %c0_32 = arith.constant 0 : index
    %c0_33 = arith.constant 0 : index
    %57 = vector.load %arg12[%c0_32, %c0_33] : memref<1x16xf32, #tpu.memory_space<vmem>>, vector<1x16xf32>
    tpu.vector_store %arg12[%c0_32, %c0_33], %56 {strides = array<i32>} : memref<1x16xf32, #tpu.memory_space<vmem>>, vector<1x16xf32>,
    return
  }
  func.func @transform_0(%arg0: i32) -> (i32, i32) {
    %c0_i32 = arith.constant 0 : i32
    %c0_i32_0 = arith.constant 0 : i32
    return %arg0, %c0_i32 : i32, i32
  }
  func.func @transform_1(%arg0: i32) -> (i32, i32) {
    %c0_i32 = arith.constant 0 : i32
    %c0_i32_0 = arith.constant 0 : i32
    return %arg0, %c0_i32 : i32, i32
  }
  func.func @transform_2(%arg0: i32) -> (i32, i32) {
    %c0_i32 = arith.constant 0 : i32
    %c0_i32_0 = arith.constant 0 : i32
    %c0_i32_1 = arith.constant 0 : i32
    return %c0_i32, %c0_i32_0 : i32, i32
  }
  func.func @transform_3(%arg0: i32) -> (i32, i32) {
    %c0_i32 = arith.constant 0 : i32
    %c0_i32_0 = arith.constant 0 : i32
    %c0_i32_1 = arith.constant 0 : i32
    return %c0_i32, %c0_i32_0 : i32, i32
  }
  func.func @transform_4(%arg0: i32) -> (i32, i32) {
    %c0_i32 = arith.constant 0 : i32
    %c0_i32_0 = arith.constant 0 : i32
    %c0_i32_1 = arith.constant 0 : i32
    return %c0_i32, %c0_i32_0 : i32, i32
  }
  func.func @transform_5(%arg0: i32) -> (i32, i32) {
    %c0_i32 = arith.constant 0 : i32
    %c0_i32_0 = arith.constant 0 : i32
    %c0_i32_1 = arith.constant 0 : i32
    return %c0_i32, %c0_i32_0 : i32, i32
  }
  func.func @transform_6(%arg0: i32) -> (i32, i32) {
    %c0_i32 = arith.constant 0 : i32
    %c0_i32_0 = arith.constant 0 : i32
    %c0_i32_1 = arith.constant 0 : i32
    return %c0_i32, %c0_i32_0 : i32, i32
  }
  func.func @transform_7(%arg0: i32) -> (i32, i32, i32) {
    %c0_i32 = arith.constant 0 : i32
    %c0_i32_0 = arith.constant 0 : i32
    %c0_i32_1 = arith.constant 0 : i32
    %c0_i32_2 = arith.constant 0 : i32
    return %c0_i32, %c0_i32_0, %c0_i32_1 : i32, i32, i32
  }
  func.func @transform_8(%arg0: i32) -> (i32, i32, i32) {
    %c0_i32 = arith.constant 0 : i32
    %c0_i32_0 = arith.constant 0 : i32
    %c0_i32_1 = arith.constant 0 : i32
    %c0_i32_2 = arith.constant 0 : i32
    return %c0_i32, %c0_i32_0, %c0_i32_1 : i32, i32, i32
  }
  func.func @transform_9(%arg0: i32) -> (i32, i32) {
    %c0_i32 = arith.constant 0 : i32
    %c0_i32_0 = arith.constant 0 : i32
    %c0_i32_1 = arith.constant 0 : i32
    return %c0_i32, %c0_i32_0 : i32, i32
  }
  func.func @transform_10(%arg0: i32) -> i32 {
    %c0_i32 = arith.constant 0 : i32
    %c0_i32_0 = arith.constant 0 : i32
    return %c0_i32 : i32
  }
  func.func @transform_11(%arg0: i32) -> (i32, i32) {
    %c0_i32 = arith.constant 0 : i32
    %c0_i32_0 = arith.constant 0 : i32
    return %c0_i32, %arg0 : i32, i32
  }
}

</mosaic_0001>

<llo_original>
// kernel: tpu_custom_call.1
$region0: #{tpu_custom_call.1}
  #allocation0 [shape = 'u32[]', space=smem, size = 0x4, offset = 0x4, fixed_abs, tag = 'smem constant byte address 0x4 - core index']
  #allocation1 [shape = 'u32[144,128]{1,0:T(1,128)}', space=vmem, size = 0x12000, scoped, tag = 'internal scratch']
  #allocation2 [shape = 'f32[1]{0:T(128)S(6)}', space=smem, size = 0x200, scoped, tag = 'scoped memory for tpu_custom_call.1']
  %s0 = inlined_call_operand.vmem [shape: f32[16,8], index: 0, kind: input, shape index: {}]
  %s1 = inlined_call_operand.vmem [shape: f32[16,24], index: 1, kind: input, shape index: {}]
  %s2 = inlined_call_operand.hbm [shape: f32[8,32], index: 2, kind: input, shape index: {}]
  %s3 = inlined_call_operand.hbm [shape: f32[24,32], index: 3, kind: input, shape index: {}]
  %s4 = inlined_call_operand.vmem [shape: f32[1,32], index: 4, kind: input, shape index: {}]
  %s5 = inlined_call_operand.vmem [shape: f32[1,32], index: 5, kind: input, shape index: {}]
  %s6 = inlined_call_operand.vmem [shape: f32[1,32], index: 6, kind: input, shape index: {}]
  %s7 = inlined_call_operand.vmem [shape: f32[1,32,32], index: 7, kind: input, shape index: {}]
  %s8 = inlined_call_operand.vmem [shape: f32[1,1,32], index: 8, kind: input, shape index: {}]
  %s9 = inlined_call_operand.vmem [shape: f32[1,32], index: 9, kind: input, shape index: {}]
  %s10 = inlined_call_operand.<no memory space> [shape: f32[1], index: 10, kind: input, shape index: {}]
  %s11 = inlined_call_operand.hbm [shape: f32[1,16], index: 11, kind: output, shape index: {}]
  %s12 = sld [smem:[#allocation0]]
  $region62: #{tpu_custom_call.1} parent=0
    _
  %s14 = ssub.s32 1, %s12
  %s15 = scalar_select 0, %s14, %s12
  %16 = sst [smem:[#allocation2]] %s10
  $region1: #{tpu_custom_call.1} parent=0
    #allocation3 [shape = 'u8[4096]{0}', space=vmem, size = 0x1000, scoped, tag = 'input window, operand 2, single buffered']
    #allocation4 [shape = 's32[1]{0}', space=sflag, size = 0x4, scoped, tag = 'scoped memory for tpu_custom_call.1']
    #allocation5 [shape = 's32[1]{0}', space=sflag, size = 0x4, scoped, tag = 'scoped memory for tpu_custom_call.1']
    #allocation6 [shape = 'u8[12288]{0}', space=vmem, size = 0x3000, scoped, tag = 'input window, operand 3, single buffered']
    #allocation7 [shape = 's32[1]{0}', space=sflag, size = 0x4, scoped, tag = 'scoped memory for tpu_custom_call.1']
    #allocation8 [shape = 'u8[512]{0}', space=vmem, size = 0x400, scoped, tag = 'output window, operand 0, single buffered']
    %17 = vsyncpa [#allocation4], 0
    %18 = vsyncpa [#allocation7], 0
    %19 = vsyncpa [#allocation5], 0
    // Predicated region
    $region2: #{tpu_custom_call.1} parent=1 // pred_check
      _
    $region3: #{tpu_custom_call.1} parent=1 // pred_check_branch
      %21 = sbr.rel (0) target = $region5
    $region4: #{tpu_custom_call.1} parent=1 // pred_region
      _
    $region5: #{tpu_custom_call.1} parent=1 // pred_fallthru
      _
    // Predicated region
    $region6: #{tpu_custom_call.1} parent=1 // pred_check
      _
    $region7: #{tpu_custom_call.1} parent=1 // pred_check_branch
      %23 = sbr.rel (0) target = $region9
    $region8: #{tpu_custom_call.1} parent=1 // pred_region
      _
    $region9: #{tpu_custom_call.1} parent=1 // pred_fallthru
      _
    // Predicated region
    $region10: #{tpu_custom_call.1} parent=1 // pred_check
      _
    $region11: #{tpu_custom_call.1} parent=1 // pred_check_branch
      %25 = sbr.rel (0) target = $region13
    $region12: #{tpu_custom_call.1} parent=1 // pred_region
      %s27 = ssub.s32 128, 128
      %28 = vsyncadd [#allocation4], %s27
      %s30 = sshll.u32 [#allocation3], 4
      %s31 = int_to_ptr.vmem [resolvable:$true] %s30
      %33 = dma.hbm_to_vmem [thread:$0]  %s2, 128, %s31, [#allocation4]
    $region13: #{tpu_custom_call.1} parent=1 // pred_fallthru
      _
    // Predicated region
    $region14: #{tpu_custom_call.1} parent=1 // pred_check
      _
    $region15: #{tpu_custom_call.1} parent=1 // pred_check_branch
      %35 = sbr.rel (0) target = $region17
    $region16: #{tpu_custom_call.1} parent=1 // pred_region
      %s37 = ssub.s32 384, 384
      %38 = vsyncadd [#allocation7], %s37
      %s39 = sshll.u32 [#allocation6], 4
      %s40 = int_to_ptr.vmem [resolvable:$true] %s39
      %45 = dma.hbm_to_vmem [thread:$0]  %s3, 384, %s40, [#allocation7], 128, 128, 8
    $region17: #{tpu_custom_call.1} parent=1 // pred_fallthru
      _
    // Predicated region
    $region18: #{tpu_custom_call.1} parent=1 // pred_check
      _
    $region19: #{tpu_custom_call.1} parent=1 // pred_check_branch
      %47 = sbr.rel (0) target = $region21
    $region20: #{tpu_custom_call.1} parent=1 // pred_region
      _
    $region21: #{tpu_custom_call.1} parent=1 // pred_fallthru
      _
    // Predicated region
    $region22: #{tpu_custom_call.1} parent=1 // pred_check
      _
    $region23: #{tpu_custom_call.1} parent=1 // pred_check_branch
      %49 = sbr.rel (0) target = $region25
    $region24: #{tpu_custom_call.1} parent=1 // pred_region
      _
    $region25: #{tpu_custom_call.1} parent=1 // pred_fallthru
      _
    // Predicated region
    $region26: #{tpu_custom_call.1} parent=1 // pred_check
      _
    $region27: #{tpu_custom_call.1} parent=1 // pred_check_branch
      %51 = sbr.rel (0) target = $region29
    $region28: #{tpu_custom_call.1} parent=1 // pred_region
      _
    $region29: #{tpu_custom_call.1} parent=1 // pred_fallthru
      _
    // Predicated region
    $region30: #{tpu_custom_call.1} parent=1 // pred_check
      _
    $region31: #{tpu_custom_call.1} parent=1 // pred_check_branch
      %53 = sbr.rel (0) target = $region33
    $region32: #{tpu_custom_call.1} parent=1 // pred_region
      _
    $region33: #{tpu_custom_call.1} parent=1 // pred_fallthru
      _
    // Predicated region
    $region34: #{tpu_custom_call.1} parent=1 // pred_check
      _
    $region35: #{tpu_custom_call.1} parent=1 // pred_check_branch
      %55 = sbr.rel (0) target = $region37
    $region36: #{tpu_custom_call.1} parent=1 // pred_region
      _
    $region37: #{tpu_custom_call.1} parent=1 // pred_fallthru
      _
    // Predicated region
    $region38: #{tpu_custom_call.1} parent=1 // pred_check
      _
    $region39: #{tpu_custom_call.1} parent=1 // pred_check_branch
      %57 = sbr.rel (0) target = $region41
    $region40: #{tpu_custom_call.1} parent=1 // pred_region
      _
    $region41: #{tpu_custom_call.1} parent=1 // pred_fallthru
      _
    // Predicated region
    $region42: #{tpu_custom_call.1} parent=1 // pred_check
      _
    $region43: #{tpu_custom_call.1} parent=1 // pred_check_branch
      %59 = sbr.rel (0) target = $region45
    $region44: #{tpu_custom_call.1} parent=1 // pred_region
      _
    $region45: #{tpu_custom_call.1} parent=1 // pred_fallthru
      _
    // Predicated region
    $region46: #{tpu_custom_call.1} parent=1 // pred_check
      _
    $region47: #{tpu_custom_call.1} parent=1 // pred_check_branch
      %61 = sbr.rel (0) target = $region49
    $region48: #{tpu_custom_call.1} parent=1 // pred_region
      %62 = dma.done [#allocation4], 128
    $region49: #{tpu_custom_call.1} parent=1 // pred_fallthru
      _
    // Predicated region
    $region50: #{tpu_custom_call.1} parent=1 // pred_check
      _
    $region51: #{tpu_custom_call.1} parent=1 // pred_check_branch
      %64 = sbr.rel (0) target = $region53
    $region52: #{tpu_custom_call.1} parent=1 // pred_region
      %65 = dma.done [#allocation7], 384
    $region53: #{tpu_custom_call.1} parent=1 // pred_fallthru
      _
    %v66 = vld [vmem:[%s0] sm:$0xff]
    %v67 = vld [vmem:[%s0 + $0x8] sm:$0xff]
    %v68 = vld [vmem:[#allocation3] sm:$0xff]
    %v69 = vld [vmem:[%s1] sm:$0xff]
    %v70 = vld [vmem:[%s1 + $0x8] sm:$0xff]
    %v71 = vld [vmem:[#allocation6] sm:$0xff]
    %v72 = vld [vmem:[#allocation6 + $0x8] sm:$0xff]
    %v73 = vld [vmem:[#allocation6 + $0x10] sm:$0xff]
    %vm74 = vcmask 195584
    %v76 = vsel %vm74, %v69, 0
    %v79 = vsel %vm74, %v70, 0
    %81 = vmatprep.subr.mxu0 0.0
    %82 = vmatpush1.msra.mxu0 %v71
    %83 = vmatprep.subr.mxu0 0.0
    %84 = vmatpush1.msra.mxu0 %v72
    %85 = vmatprep.subr.mxu0 0.0
    %86 = vmatpush1.msra.mxu0 %v73
    %87 = vmatprep.subr.mxu0 0.0
    %88 = vmatpush1.msra.mxu0 0.0
    %89 = vmatprep.subr.mxu0 0.0
    %90 = vmatpush1.msra.mxu0 0.0
    %91 = vmatprep.subr.mxu0 0.0
    %92 = vmatpush1.msra.mxu0 0.0
    %93 = vmatprep.subr.mxu0 0.0
    %94 = vmatpush1.msra.mxu0 0.0
    %95 = vmatprep.subr.mxu0 0.0
    %96 = vmatpush1.msra.mxu0 0.0
    %97 = vmatprep.subr.mxu0 0.0
    %98 = vmatpush1.msra.mxu0 0.0
    %99 = vmatprep.subr.mxu0 0.0
    %100 = vmatpush1.msra.mxu0 0.0
    %101 = vmatprep.subr.mxu0 0.0
    %102 = vmatpush1.msra.mxu0 0.0
    %103 = vmatprep.subr.mxu0 0.0
    %104 = vmatpush1.msra.mxu0 0.0
    %105 = vmatprep.subr.mxu0 0.0
    %106 = vmatpush1.msra.mxu0 0.0
    %107 = vmatprep.subr.mxu0 0.0
    %108 = vmatpush1.msra.mxu0 0.0
    %109 = vmatprep.subr.mxu0 0.0
    %110 = vmatpush1.msra.mxu0 0.0
    %111 = vmatprep.subr.mxu0 0.0
    %112 = vmatpush1.msra.mxu0 0.0
    %113 = vmatprep.subr.mxu0 0.0
    %114 = vmatpush1.msra.mxu0 0.0
    %115 = vmatprep.subr.mxu0 0.0
    %116 = vmatpush1.msra.mxu0 0.0
    %117 = vmatprep.subr.mxu0 0.0
    %118 = vmatpush1.msra.mxu0 0.0
    %119 = vmatprep.subr.mxu0 0.0
    %120 = vmatpush1.msra.mxu0 0.0
    %121 = vmatprep.subr.mxu0 0.0
    %122 = vmatpush1.msra.mxu0 0.0
    %123 = vmatprep.subr.mxu0 0.0
    %124 = vmatpush1.msra.mxu0 0.0
    %125 = vmatprep.subr.mxu0 0.0
    %126 = vmatpush1.msra.mxu0 0.0
    %127 = vmatprep.subr.mxu0 0.0
    %128 = vmatpush1.msra.mxu0 0.0
    %129 = vmatprep.subr.mxu0 0.0
    %130 = vmatpush1.msra.mxu0 0.0
    %131 = vmatprep.subr.mxu0 0.0
    %132 = vmatpush1.msra.mxu0 0.0
    %133 = vmatprep.subr.mxu0 0.0
    %134 = vmatpush1.msra.mxu0 0.0
    %135 = vmatprep.subr.mxu0 0.0
    %136 = vmatpush1.msra.mxu0 0.0
    %137 = vmatprep.subr.mxu0 0.0
    %138 = vmatpush1.msra.mxu0 0.0
    %139 = vmatprep.subr.mxu0 0.0
    %140 = vmatpush1.msra.mxu0 0.0
    %141 = vmatprep.subr.mxu0 0.0
    %142 = vmatpush1.msra.mxu0 0.0
    %143 = vmatprep.subr.mxu0 0.0
    %144 = vmatpush1.msra.mxu0 0.0
    %145 = vmatprep.mubr.f32.mxu0 0.0
    %146 = vmatmul.mubr.f32.gmra.mrb[0].mxu0 %v76
    %v147 = vpop.f32.mrb[0].mxu0
    %v148 = vadd.f32 0.0, %v147
    %v149 = vpop.f32.mrb[0].mxu0
    %150 = vmatprep.mubr.f32.mxu0 0.0
    %151 = vmatmul.mubr.f32.gmra.mrb[0].mxu0 %v79
    %v152 = vpop.f32.mrb[0].mxu0
    %v153 = vadd.f32 0.0, %v152
    %v154 = vpop.f32.mrb[0].mxu0
    %155 = vdwg.mxu0
    %vm156 = vcmask 64512
    %v158 = vsel %vm156, %v66, 0
    %v161 = vsel %vm156, %v67, 0
    %163 = vmatprep.subr.mxu0 0.0
    %164 = vmatpush1.msra.mxu0 %v68
    %165 = vmatprep.subr.mxu0 0.0
    %166 = vmatpush1.msra.mxu0 0.0
    %167 = vmatprep.subr.mxu0 0.0
    %168 = vmatpush1.msra.mxu0 0.0
    %169 = vmatprep.subr.mxu0 0.0
    %170 = vmatpush1.msra.mxu0 0.0
    %171 = vmatprep.subr.mxu0 0.0
    %172 = vmatpush1.msra.mxu0 0.0
    %173 = vmatprep.subr.mxu0 0.0
    %174 = vmatpush1.msra.mxu0 0.0
    %175 = vmatprep.subr.mxu0 0.0
    %176 = vmatpush1.msra.mxu0 0.0
    %177 = vmatprep.subr.mxu0 0.0
    %178 = vmatpush1.msra.mxu0 0.0
    %179 = vmatprep.subr.mxu0 0.0
    %180 = vmatpush1.msra.mxu0 0.0
    %181 = vmatprep.subr.mxu0 0.0
    %182 = vmatpush1.msra.mxu0 0.0
    %183 = vmatprep.subr.mxu0 0.0
    %184 = vmatpush1.msra.mxu0 0.0
    %185 = vmatprep.subr.mxu0 0.0
    %186 = vmatpush1.msra.mxu0 0.0
    %187 = vmatprep.subr.mxu0 0.0
    %188 = vmatpush1.msra.mxu0 0.0
    %189 = vmatprep.subr.mxu0 0.0
    %190 = vmatpush1.msra.mxu0 0.0
    %191 = vmatprep.subr.mxu0 0.0
    %192 = vmatpush1.msra.mxu0 0.0
    %193 = vmatprep.subr.mxu0 0.0
    %194 = vmatpush1.msra.mxu0 0.0
    %195 = vmatprep.subr.mxu0 0.0
    %196 = vmatpush1.msra.mxu0 0.0
    %197 = vmatprep.subr.mxu0 0.0
    %198 = vmatpush1.msra.mxu0 0.0
    %199 = vmatprep.subr.mxu0 0.0
    %200 = vmatpush1.msra.mxu0 0.0
    %201 = vmatprep.subr.mxu0 0.0
    %202 = vmatpush1.msra.mxu0 0.0
    %203 = vmatprep.subr.mxu0 0.0
    %204 = vmatpush1.msra.mxu0 0.0
    %205 = vmatprep.subr.mxu0 0.0
    %206 = vmatpush1.msra.mxu0 0.0
    %207 = vmatprep.subr.mxu0 0.0
    %208 = vmatpush1.msra.mxu0 0.0
    %209 = vmatprep.subr.mxu0 0.0
    %210 = vmatpush1.msra.mxu0 0.0
    %211 = vmatprep.subr.mxu0 0.0
    %212 = vmatpush1.msra.mxu0 0.0
    %213 = vmatprep.subr.mxu0 0.0
    %214 = vmatpush1.msra.mxu0 0.0
    %215 = vmatprep.subr.mxu0 0.0
    %216 = vmatpush1.msra.mxu0 0.0
    %217 = vmatprep.subr.mxu0 0.0
    %218 = vmatpush1.msra.mxu0 0.0
    %219 = vmatprep.subr.mxu0 0.0
    %220 = vmatpush1.msra.mxu0 0.0
    %221 = vmatprep.subr.mxu0 0.0
    %222 = vmatpush1.msra.mxu0 0.0
    %223 = vmatprep.subr.mxu0 0.0
    %224 = vmatpush1.msra.mxu0 0.0
    %225 = vmatprep.subr.mxu0 0.0
    %226 = vmatpush1.msra.mxu0 0.0
    %227 = vmatprep.mubr.f32.mxu0 0.0
    %228 = vmatmul.mubr.f32.gmra.mrb[0].mxu0 %v158
    %v229 = vpop.f32.mrb[0].mxu0
    %v230 = vadd.f32 %v148, %v229
    %v231 = vpop.f32.mrb[0].mxu0
    %232 = vmatprep.mubr.f32.mxu0 0.0
    %233 = vmatmul.mubr.f32.gmra.mrb[0].mxu0 %v161
    %v234 = vpop.f32.mrb[0].mxu0
    %v235 = vadd.f32 %v153, %v234
    %v236 = vpop.f32.mrb[0].mxu0
    %237 = vdwg.mxu0
    %v238 = vld [vmem:[%s4] sm:$0x1]
    %v240 = vlaneseq
    %v241 = vshrl.u32 %v240, 7
    %v242 = vsub.s32 0, %v241
    %v243 = vrot.slane %v238, %v242
    %v245 = vadd.f32 %v230, %v243
    %v246 = vadd.f32 %v235, %v243
    %vm247 = vcmask 261120
    %v248 = vsel %vm247, %v245, 0.0
    %249 = vadd.xlane.f32.xlu0 %v248
    %v250 = vpop.xlane.xlu0 %249
    %v251 = vsel %vm247, %v246, 0.0
    %252 = vadd.xlane.f32.xlu0 %v251
    %v253 = vpop.xlane.xlu0 %252
    %v254 = vrcp.pop 32.0
    %v255 = vmul.f32 %v250, %v254
    %v256 = vmul.f32 %v253, %v254
    %v257 = vsub.f32 %v245, %v255
    %v258 = vsub.f32 %v246, %v256
    %v259 = vmul.f32 %v257, %v257
    %v260 = vmul.f32 %v258, %v258
    %v261 = vsel %vm247, %v259, 0.0
    %262 = vadd.xlane.f32.xlu0 %v261
    %v263 = vpop.xlane.xlu0 %262
    %v264 = vsel %vm247, %v260, 0.0
    %265 = vadd.xlane.f32.xlu0 %v264
    %v266 = vpop.xlane.xlu0 %265
    %v267 = vmul.f32 %v263, %v254
    %v268 = vmul.f32 %v266, %v254
    %v269 = vadd.f32 %v267, 1e-05
    %v270 = vadd.f32 %v268, 1e-05
    %v271 = vrsqrt.pop %v269
    %v272 = vrsqrt.pop %v270
    %v273 = vmul.f32 %v257, %v271
    %v274 = vmul.f32 %v258, %v272
    %v275 = vld [vmem:[%s5] sm:$0x1]
    %v277 = vlaneseq
    %v278 = vshrl.u32 %v277, 7
    %v279 = vsub.s32 0, %v278
    %v280 = vrot.slane %v275, %v279
    %v282 = vmul.f32 %v273, %v280
    %v283 = vmul.f32 %v274, %v280
    %v284 = vld [vmem:[%s6] sm:$0x1]
    %v286 = vlaneseq
    %v287 = vshrl.u32 %v286, 7
    %v288 = vsub.s32 0, %v287
    %v289 = vrot.slane %v284, %v288
    %v291 = vadd.f32 %v282, %v289
    %v292 = vadd.f32 %v283, %v289
    %v293 = vtanh.pop %v291
    %v294 = vtanh.pop %v292
    %v295 = vld [vmem:[%s7] sm:$0xff]
    %v296 = vld [vmem:[%s7 + $0x8] sm:$0xff]
    %v297 = vld [vmem:[%s7 + $0x10] sm:$0xff]
    %v298 = vld [vmem:[%s7 + $0x18] sm:$0xff]
    %v299 = vld [vmem:[%s8] sm:$0x1]
    %v301 = vlaneseq
    %v302 = vshrl.u32 %v301, 7
    %v303 = vsub.s32 0, %v302
    %v304 = vrot.slane %v299, %v303
    %v307 = vsel %vm247, %v293, 0
    %v310 = vsel %vm247, %v294, 0
    %312 = vmatprep.subr.mxu0 0.0
    %313 = vmatpush1.msra.mxu0 %v295
    %314 = vmatprep.subr.mxu0 0.0
    %315 = vmatpush1.msra.mxu0 %v296
    %316 = vmatprep.subr.mxu0 0.0
    %317 = vmatpush1.msra.mxu0 %v297
    %318 = vmatprep.subr.mxu0 0.0
    %319 = vmatpush1.msra.mxu0 %v298
    %320 = vmatprep.subr.mxu0 0.0
    %321 = vmatpush1.msra.mxu0 0.0
    %322 = vmatprep.subr.mxu0 0.0
    %323 = vmatpush1.msra.mxu0 0.0
    %324 = vmatprep.subr.mxu0 0.0
    %325 = vmatpush1.msra.mxu0 0.0
    %326 = vmatprep.subr.mxu0 0.0
    %327 = vmatpush1.msra.mxu0 0.0
    %328 = vmatprep.subr.mxu0 0.0
    %329 = vmatpush1.msra.mxu0 0.0
    %330 = vmatprep.subr.mxu0 0.0
    %331 = vmatpush1.msra.mxu0 0.0
    %332 = vmatprep.subr.mxu0 0.0
    %333 = vmatpush1.msra.mxu0 0.0
    %334 = vmatprep.subr.mxu0 0.0
    %335 = vmatpush1.msra.mxu0 0.0
    %336 = vmatprep.subr.mxu0 0.0
    %337 = vmatpush1.msra.mxu0 0.0
    %338 = vmatprep.subr.mxu0 0.0
    %339 = vmatpush1.msra.mxu0 0.0
    %340 = vmatprep.subr.mxu0 0.0
    %341 = vmatpush1.msra.mxu0 0.0
    %342 = vmatprep.subr.mxu0 0.0
    %343 = vmatpush1.msra.mxu0 0.0
    %344 = vmatprep.subr.mxu0 0.0
    %345 = vmatpush1.msra.mxu0 0.0
    %346 = vmatprep.subr.mxu0 0.0
    %347 = vmatpush1.msra.mxu0 0.0
    %348 = vmatprep.subr.mxu0 0.0
    %349 = vmatpush1.msra.mxu0 0.0
    %350 = vmatprep.subr.mxu0 0.0
    %351 = vmatpush1.msra.mxu0 0.0
    %352 = vmatprep.subr.mxu0 0.0
    %353 = vmatpush1.msra.mxu0 0.0
    %354 = vmatprep.subr.mxu0 0.0
    %355 = vmatpush1.msra.mxu0 0.0
    %356 = vmatprep.subr.mxu0 0.0
    %357 = vmatpush1.msra.mxu0 0.0
    %358 = vmatprep.subr.mxu0 0.0
    %359 = vmatpush1.msra.mxu0 0.0
    %360 = vmatprep.subr.mxu0 0.0
    %361 = vmatpush1.msra.mxu0 0.0
    %362 = vmatprep.subr.mxu0 0.0
    %363 = vmatpush1.msra.mxu0 0.0
    %364 = vmatprep.subr.mxu0 0.0
    %365 = vmatpush1.msra.mxu0 0.0
    %366 = vmatprep.subr.mxu0 0.0
    %367 = vmatpush1.msra.mxu0 0.0
    %368 = vmatprep.subr.mxu0 0.0
    %369 = vmatpush1.msra.mxu0 0.0
    %370 = vmatprep.subr.mxu0 0.0
    %371 = vmatpush1.msra.mxu0 0.0
    %372 = vmatprep.subr.mxu0 0.0
    %373 = vmatpush1.msra.mxu0 0.0
    %374 = vmatprep.subr.mxu0 0.0
    %375 = vmatpush1.msra.mxu0 0.0
    %376 = vmatprep.mubr.f32.mxu0 0.0
    %377 = vmatmul.mubr.f32.gmra.mrb[0].mxu0 %v307
    %v378 = vpop.f32.mrb[0].mxu0
    %v379 = vadd.f32 %v304, %v378
    %v380 = vpop.f32.mrb[0].mxu0
    %381 = vmatprep.mubr.f32.mxu0 0.0
    %382 = vmatmul.mubr.f32.gmra.mrb[0].mxu0 %v310
    %v383 = vpop.f32.mrb[0].mxu0
    %v384 = vadd.f32 %v304, %v383
    %v385 = vpop.f32.mrb[0].mxu0
    %386 = vdwg.mxu0
    %v387 = vmax.f32 %v379, 0.0
    %v388 = vmax.f32 %v384, 0.0
    %v389 = vld [vmem:[%s9] sm:$0x1]
    %v391 = vlaneseq
    %v392 = vshrl.u32 %v391, 7
    %v393 = vsub.s32 0, %v392
    %v394 = vrot.slane %v389, %v393
    %v396 = vmul.f32 %v387, %v394
    %v397 = vmul.f32 %v388, %v394
    %v398 = vsel %vm247, %v396, 0.0
    %399 = vadd.xlane.f32.xlu0 %v398
    %v400 = vpop.xlane.xlu0 %399
    %v401 = vsel %vm247, %v397, 0.0
    %402 = vadd.xlane.f32.xlu0 %v401
    %v403 = vpop.xlane.xlu0 %402
    %s404 = sld [smem:[#allocation2]]
    %v405 = vstv %s404
    %v406 = vadd.f32 %v400, %v405
    %v407 = vadd.f32 %v403, %v405
    %v408 = vxor.u32 %v406, 2147483648
    %v409 = vxor.u32 %v407, 2147483648
    %v410 = vmul.f32 %v408, 1.442695
    %v411 = vpow.pop %v410
    %v412 = vmul.f32 %v409, 1.442695
    %v413 = vpow.pop %v412
    %v414 = vadd.f32 %v411, 1.0
    %v415 = vadd.f32 %v413, 1.0
    %v416 = vrcp.pop %v414
    %v417 = vmul.f32 1.0, %v416
    %v418 = vrcp.pop %v415
    %v419 = vmul.f32 1.0, %v418
    %v422 = vlaneseq
    %v423 = vand.u32 %v422, 127
    %v424 = vlaneseq
    %v425 = vshrl.u32 %v424, 7
    %v426 = vsub.s32 %v423, %v425
    %v427 = vrot.slane %v417, %v426
    %v428 = vadd.s32 %v423, 4294967288
    %v429 = vlaneseq
    %v430 = vshrl.u32 %v429, 7
    %v431 = vsub.s32 %v428, %v430
    %v432 = vrot.slane %v419, %v431
    %vm433 = vcmask 130112
    %v434 = vsel %vm433, %v432, %v427
    %vm436 = vcmask 122880
    %437 = vst.msk [vmem:[#allocation8] sm:$0x1] %vm436, %v434
    // Predicated region
    $region54: #{tpu_custom_call.1} parent=1 // pred_check
      _
    $region55: #{tpu_custom_call.1} parent=1 // pred_check_branch
      %439 = sbr.rel (0) target = $region57
    $region56: #{tpu_custom_call.1} parent=1 // pred_region
      %s441 = ssub.s32 16, 16
      %442 = vsyncadd [#allocation5], %s441
      %s444 = sshll.u32 [#allocation8], 4
      %s445 = int_to_ptr.vmem [resolvable:$true] %s444
      %447 = dma.vmem_to_hbm [thread:$0]  %s445, 16, %s11, [#allocation5]
    $region57: #{tpu_custom_call.1} parent=1 // pred_fallthru
      _
    // Predicated region
    $region58: #{tpu_custom_call.1} parent=1 // pred_check
      _
    $region59: #{tpu_custom_call.1} parent=1 // pred_check_branch
      %449 = sbr.rel (0) target = $region61
    $region60: #{tpu_custom_call.1} parent=1 // pred_region
      %450 = dma.done [#allocation5], 16
    $region61: #{tpu_custom_call.1} parent=1 // pred_fallthru
      _
    %451 = vsyncpa [#allocation4], 1
    %452 = vsyncpa [#allocation7], 1
    %453 = vsyncpa [#allocation5], 1

</llo_original>
